<compile_context>
chip_gen: v7x
topology: tpu7x:2x2x1
jax: 0.10.0
libtpu: 0.0.40
codegen_flags: <defaults>
</compile_context>

<pallas_src>
import numpy as np
import jax
import jax.numpy as jnp
from jax.experimental import pallas as pl
from jax.experimental.pallas import tpu as pltpu

# ----- problem sizes (small, consistent with the module) -----
N = 16             # number of graph nodes
C_IN = 32          # in_channels (== heads*out_channels so the residual add is valid)
C_OUT = 4          # out_channels per head
HEADS = 8
F = C_OUT * HEADS  # 32 = concat'ed GAT output width
HN = HEADS * N     # 128 = lane width of the (dst, head*src) score slab
FF = 128           # ff_hidden_dim
LN_EPS = 1e-5
NEG_SLOPE = 0.2    # GATConv leaky_relu slope

# ----- structural constants, built once at import time with numpy -----
_ROW_HEAD = np.arange(HN) // N          # head owning lane h*N+j
_COL_HEAD = np.arange(F) // C_OUT       # head owning feature column h*C_OUT+d
SEG_SUM_NP = (_ROW_HEAD[:, None] == _ROW_HEAD[None, :]).astype(np.float32)    # (128,128) block-diag ones
HEAD_MASK_NP = (_ROW_HEAD[:, None] == _COL_HEAD[None, :]).astype(np.float32)  # (128, 32)


# --------------------------- fused Pallas kernel ---------------------------

def fused_gat_encoder_kernel(x_ref, adj_ref, vec_ref, w32_ref, w128_ref, hmask_ref, out_ref):
    """GATConv (multi-head softmax over sources per dst) + residual + LN1 + FFN + residual + LN2."""
    x = x_ref[...]              # (N, C_IN)
    adj = adj_ref[...]          # (N, N), adj[dst, src] = 1 on edges (diag forced to 1)
    vecs = vec_ref[...]         # (16, 128) packed small vectors + att_src
    w32 = w32_ref[...]          # (32, 288) = [ffn_w1 | a_dst_exp | w_gat]
    w128 = w128_ref[...]        # (128, 160) = [seg_sum | ffn_w2]
    head_mask = hmask_ref[...]  # (128, 32)

    # unpack (static slices; lane offsets of the big packs are vreg-aligned)
    ffn_b1 = vecs[0:1, :]               # (1, FF)
    bias_gat = vecs[1:2, :F]
    ln1_w = vecs[2:3, :F]
    ln1_b = vecs[3:4, :F]
    ffn_b2 = vecs[4:5, :F]
    ln2_w = vecs[5:6, :F]
    ln2_b = vecs[6:7, :F]
    a_srcT = vecs[8:16, :F]             # (HEADS, F): att_src block-embedded per head

    ffn_w1 = w32[:, 0:FF]               # (C_IN, FF)
    a_dst_exp = w32[:, FF:FF + HN]      # (F, HN)
    w_gat = w32[:, FF + HN:FF + HN + C_IN]  # (C_IN, F)
    seg_sum = w128[:, 0:HN]             # (HN, HN)
    ffn_w2 = w128[:, HN:HN + F]         # (FF, F)

    # ---- GATConv: linear transform + lane-dense attention scores ----
    xp = jnp.dot(x, w_gat, preferred_element_type=jnp.float32)            # (N, F), head-major columns
    # dst term: lane h*N+j gets s_dst[i, h] (independent of j) in one matmul
    d_exp = jnp.dot(xp, a_dst_exp, preferred_element_type=jnp.float32)    # (N, HN)
    # src term: s_srcT[h, j] = s_src[j, h] (rhs-transposed matmul keeps nodes on lanes)
    s_srcT = jax.lax.dot_general(a_srcT, xp, (((1,), (1,)), ((), ())),
                                 preferred_element_type=jnp.float32)      # (HEADS, N)
    # spread heads from sublanes into 16-lane blocks with slice + lane-concat (supported ops only)
    src_row = jnp.concatenate([s_srcT[h:h + 1, :] for h in range(HEADS)], axis=1)  # (1, HN)

    e = d_exp + src_row                                                   # (N, HN) raw scores
    e = jnp.maximum(e, NEG_SLOPE * e)                                     # leaky_relu(0.2), 2 VALU ops
    adj_bias = (adj - 1.0) * 1e30                                         # 0 on edges, -1e30 off-edges
    e = e + jnp.concatenate([adj_bias] * HEADS, axis=1)                   # additive mask, tiled per head

    # safe softmax with a shared per-dst-row max; self-loops guarantee a finite max and a
    # positive per-head denominator, masked lanes underflow to exactly 0 after exp.
    e = e - jnp.max(e, axis=-1, keepdims=True)
    p = jnp.exp(e)                                                        # 2 vregs through EUP
    denom = jnp.dot(p, seg_sum, preferred_element_type=jnp.float32)       # per-head sums broadcast to lanes
    attn = p / denom                                                      # exact per-(dst, head) softmax

    # ---- aggregation: sublane-tile xp per head, zero cross-head columns, one matmul ----
    big_xp = jnp.concatenate([xp] * HEADS, axis=0) * head_mask            # (HN, F)
    g = jnp.dot(attn, big_xp, preferred_element_type=jnp.float32) + bias_gat  # (N, F)

    # ---- encoder tail (dropout = identity in eval mode) ----
    h = g + x                                                             # residual
    mu = jnp.mean(h, axis=-1, keepdims=True)
    var = jnp.mean(jnp.square(h - mu), axis=-1, keepdims=True)
    h1 = (h - mu) * jax.lax.rsqrt(var + LN_EPS) * ln1_w + ln1_b

    f = jnp.maximum(jnp.dot(h1, ffn_w1, preferred_element_type=jnp.float32) + ffn_b1, 0.0)
    f = jnp.dot(f, ffn_w2, preferred_element_type=jnp.float32) + ffn_b2

    h2 = f + h1                                                           # residual
    mu2 = jnp.mean(h2, axis=-1, keepdims=True)
    var2 = jnp.mean(jnp.square(h2 - mu2), axis=-1, keepdims=True)
    out_ref[...] = (h2 - mu2) * jax.lax.rsqrt(var2 + LN_EPS) * ln2_w + ln2_b


# --------------------------- parameter packing (once, at load time) ---------------------------

def prepare_packed_params(params):
    """Bake learned params + structural constants into a handful of lane-dense slabs (numpy, no tracing)."""
    att_src = np.asarray(params['att_src'], np.float32)   # (HEADS, C_OUT)
    att_dst = np.asarray(params['att_dst'], np.float32)

    # a_dst_exp (F, HN): column h*N+j carries att_dst[h, :] in rows h*C_OUT:(h+1)*C_OUT
    a_dst_exp = np.zeros((F, HN), np.float32)
    for h in range(HEADS):
        a_dst_exp[h * C_OUT:(h + 1) * C_OUT, h * N:(h + 1) * N] = att_dst[h][:, None]
    # a_srcT (HEADS, F): row h carries att_src[h, :] in columns h*C_OUT:(h+1)*C_OUT
    a_srcT = np.zeros((HEADS, F), np.float32)
    for h in range(HEADS):
        a_srcT[h, h * C_OUT:(h + 1) * C_OUT] = att_src[h]

    # vec_pack (16, 128): row 0 = ffn_b1; rows 1-6 = (1,32) vectors; rows 8-15 = a_srcT
    vec_pack = np.zeros((16, HN), np.float32)
    vec_pack[0, :FF] = np.asarray(params['ffn_b1'], np.float32).reshape(FF)
    vec_pack[1, :F] = np.asarray(params['bias_gat'], np.float32).reshape(F)
    vec_pack[2, :F] = np.asarray(params['ln1_w'], np.float32).reshape(F)
    vec_pack[3, :F] = np.asarray(params['ln1_b'], np.float32).reshape(F)
    vec_pack[4, :F] = np.asarray(params['ffn_b2'], np.float32).reshape(F)
    vec_pack[5, :F] = np.asarray(params['ln2_w'], np.float32).reshape(F)
    vec_pack[6, :F] = np.asarray(params['ln2_b'], np.float32).reshape(F)
    vec_pack[8:16, :F] = a_srcT

    # 32-row pack, all lane offsets vreg-aligned: [ffn_w1 (0:128) | a_dst_exp (128:256) | w_gat (256:288)]
    w32_pack = np.concatenate([np.asarray(params['ffn_w1'], np.float32),
                               a_dst_exp,
                               np.asarray(params['w_gat'], np.float32)], axis=1)
    # 128-row pack: [seg_sum (0:128) | ffn_w2 (128:160)]
    w128_pack = np.concatenate([SEG_SUM_NP,
                                np.asarray(params['ffn_w2'], np.float32)], axis=1)

    return dict(vec_pack=jnp.asarray(vec_pack),
                w32_pack=jnp.asarray(w32_pack),
                w128_pack=jnp.asarray(w128_pack),
                head_mask=jnp.asarray(HEAD_MASK_NP))


# --------------------------- wrapper ---------------------------

def gat_transformer_layer(x, adj, packed):
    ins = (x, adj, packed['vec_pack'], packed['w32_pack'], packed['w128_pack'], packed['head_mask'])
    return pl.pallas_call(
        fused_gat_encoder_kernel,
        out_shape=jax.ShapeDtypeStruct((N, F), jnp.float32),
        in_specs=[pl.BlockSpec(memory_space=pltpu.MemorySpace.VMEM)] * len(ins),
        out_specs=pl.BlockSpec(memory_space=pltpu.MemorySpace.VMEM),
        cost_estimate=pl.CostEstimate(flops=1_100_000, transcendentals=2_080,
                                      bytes_accessed=180_000),
    )(*ins)


gat_transformer_layer_jit = jax.jit(gat_transformer_layer)


# --------------------------- pure-JAX reference ---------------------------

def reference(x, adj, p):
    xp = x @ p['w_gat']                                       # (N, H*D)
    xp_h = xp.reshape(N, HEADS, C_OUT)
    s_src = jnp.sum(xp_h * p['att_src'][None], axis=-1)       # (N, H)
    s_dst = jnp.sum(xp_h * p['att_dst'][None], axis=-1)       # (N, H)
    e = s_dst[:, None, :] + s_src[None, :, :]                 # (N_dst, N_src, H)
    e = jnp.where(e >= 0, e, NEG_SLOPE * e)
    mask = adj[:, :, None] > 0
    e = jnp.where(mask, e, -1e30)
    e = e - jnp.max(e, axis=1, keepdims=True)
    pe = jnp.where(mask, jnp.exp(e), 0.0)
    a = pe / jnp.sum(pe, axis=1, keepdims=True)               # softmax over src
    g = jnp.einsum('ijh,jhd->ihd', a, xp_h).reshape(N, F) + p['bias_gat']

    def ln(v, w, b):
        mu = jnp.mean(v, axis=-1, keepdims=True)
        var = jnp.mean(jnp.square(v - mu), axis=-1, keepdims=True)
        return (v - mu) * jax.lax.rsqrt(var + LN_EPS) * w + b

    h1 = ln(g + x, p['ln1_w'], p['ln1_b'])
    f = jnp.maximum(h1 @ p['ffn_w1'] + p['ffn_b1'], 0.0) @ p['ffn_w2'] + p['ffn_b2']
    return ln(f + h1, p['ln2_w'], p['ln2_b'])


# --------------------------- main ---------------------------

if __name__ == "__main__":
    key = jax.random.PRNGKey(0)
    keys = jax.random.split(key, 12)

    # deterministic parameter init (synthetic; not loaded from a checkpoint)
    params = {
        'w_gat':   0.1 * jax.random.normal(keys[0], (C_IN, F), jnp.float32),
        'att_src': 0.1 * jax.random.normal(keys[1], (HEADS, C_OUT), jnp.float32),
        'att_dst': 0.1 * jax.random.normal(keys[2], (HEADS, C_OUT), jnp.float32),
        'bias_gat': 0.05 * jax.random.normal(keys[3], (1, F), jnp.float32),
        'ln1_w':   jnp.ones((1, F), jnp.float32),
        'ln1_b':   jnp.zeros((1, F), jnp.float32),
        'ffn_w1':  0.1 * jax.random.normal(keys[4], (F, FF), jnp.float32),
        'ffn_b1':  0.05 * jax.random.normal(keys[5], (1, FF), jnp.float32),
        'ffn_w2':  0.1 * jax.random.normal(keys[6], (FF, F), jnp.float32),
        'ffn_b2':  0.05 * jax.random.normal(keys[7], (1, F), jnp.float32),
        'ln2_w':   jnp.ones((1, F), jnp.float32),
        'ln2_b':   jnp.zeros((1, F), jnp.float32),
    }

    # node features and a random edge list (src -> dst), densified to adjacency
    x = jax.random.normal(keys[8], (N, C_IN), jnp.float32)
    E = 48
    src = jax.random.randint(keys[9], (E,), 0, N)
    dst = jax.random.randint(keys[10], (E,), 0, N)
    adj = jnp.zeros((N, N), jnp.float32).at[dst, src].set(1.0)
    adj = jnp.maximum(adj, jnp.eye(N, dtype=jnp.float32))     # add_self_loops=True (required invariant)

    packed = prepare_packed_params(params)                    # built ONCE, outside jit

    out = gat_transformer_layer_jit(x, adj, packed)
    out = jax.block_until_ready(out)

    ref = reference(x, adj, params)
    assert out.shape == (N, F)
    assert jnp.all(jnp.isfinite(out))
    assert jnp.allclose(out, ref, rtol=1e-3, atol=1e-3), "mismatch vs JAX reference"

    print("KERNEL_OK")
</pallas_src>

<mosaic_0001>
module attributes {stable_mosaic.version = 11 : i64} {
  func.func @fused_gat_encoder_kernel(%arg0: memref<16x32xf32, #tpu.memory_space<vmem>>, %arg1: memref<16x16xf32, #tpu.memory_space<vmem>>, %arg2: memref<16x128xf32, #tpu.memory_space<vmem>>, %arg3: memref<32x288xf32, #tpu.memory_space<vmem>>, %arg4: memref<128x160xf32, #tpu.memory_space<vmem>>, %arg5: memref<128x32xf32, #tpu.memory_space<vmem>>, %arg6: memref<16x32xf32, #tpu.memory_space<vmem>>) attributes {dimension_semantics = [], scalar_prefetch = 0 : i64, scratch_operands = 0 : i64, tpu.core_type = #tpu.core_type<tc>} {
    %c0 = arith.constant 0 : index
    %c0_0 = arith.constant 0 : index
    %0 = vector.load %arg0[%c0, %c0_0] : memref<16x32xf32, #tpu.memory_space<vmem>>, vector<16x32xf32>
    %c0_1 = arith.constant 0 : index
    %c0_2 = arith.constant 0 : index
    %1 = vector.load %arg1[%c0_1, %c0_2] : memref<16x16xf32, #tpu.memory_space<vmem>>, vector<16x16xf32>
    %c0_3 = arith.constant 0 : index
    %c0_4 = arith.constant 0 : index
    %2 = vector.load %arg2[%c0_3, %c0_4] : memref<16x128xf32, #tpu.memory_space<vmem>>, vector<16x128xf32>
    %c0_5 = arith.constant 0 : index
    %c0_6 = arith.constant 0 : index
    %3 = vector.load %arg3[%c0_5, %c0_6] : memref<32x288xf32, #tpu.memory_space<vmem>>, vector<32x288xf32>
    %c0_7 = arith.constant 0 : index
    %c0_8 = arith.constant 0 : index
    %4 = vector.load %arg4[%c0_7, %c0_8] : memref<128x160xf32, #tpu.memory_space<vmem>>, vector<128x160xf32>
    %c0_9 = arith.constant 0 : index
    %c0_10 = arith.constant 0 : index
    %5 = vector.load %arg5[%c0_9, %c0_10] : memref<128x32xf32, #tpu.memory_space<vmem>>, vector<128x32xf32>
    %6 = vector.extract_strided_slice %2 {offsets = [0, 0], sizes = [1, 128], strides = [1, 1]} : vector<16x128xf32> to vector<1x128xf32>
    %7 = vector.extract_strided_slice %2 {offsets = [1, 0], sizes = [1, 32], strides = [1, 1]} : vector<16x128xf32> to vector<1x32xf32>
    %8 = vector.extract_strided_slice %2 {offsets = [2, 0], sizes = [1, 32], strides = [1, 1]} : vector<16x128xf32> to vector<1x32xf32>
    %9 = vector.extract_strided_slice %2 {offsets = [3, 0], sizes = [1, 32], strides = [1, 1]} : vector<16x128xf32> to vector<1x32xf32>
    %10 = vector.extract_strided_slice %2 {offsets = [4, 0], sizes = [1, 32], strides = [1, 1]} : vector<16x128xf32> to vector<1x32xf32>
    %11 = vector.extract_strided_slice %2 {offsets = [5, 0], sizes = [1, 32], strides = [1, 1]} : vector<16x128xf32> to vector<1x32xf32>
    %12 = vector.extract_strided_slice %2 {offsets = [6, 0], sizes = [1, 32], strides = [1, 1]} : vector<16x128xf32> to vector<1x32xf32>
    %13 = vector.extract_strided_slice %2 {offsets = [8, 0], sizes = [8, 32], strides = [1, 1]} : vector<16x128xf32> to vector<8x32xf32>
    %14 = vector.extract_strided_slice %3 {offsets = [0, 0], sizes = [32, 128], strides = [1, 1]} : vector<32x288xf32> to vector<32x128xf32>
    %15 = vector.extract_strided_slice %3 {offsets = [0, 128], sizes = [32, 128], strides = [1, 1]} : vector<32x288xf32> to vector<32x128xf32>
    %16 = vector.extract_strided_slice %3 {offsets = [0, 256], sizes = [32, 32], strides = [1, 1]} : vector<32x288xf32> to vector<32x32xf32>
    %17 = vector.extract_strided_slice %4 {offsets = [0, 0], sizes = [128, 128], strides = [1, 1]} : vector<128x160xf32> to vector<128x128xf32>
    %18 = vector.extract_strided_slice %4 {offsets = [0, 128], sizes = [128, 32], strides = [1, 1]} : vector<128x160xf32> to vector<128x32xf32>
    %cst = arith.constant dense<0.000000e+00> : vector<16x32xf32>
    %19 = tpu.matmul %0, %16, %cst {dimension_numbers = #tpu.dot_dimension_numbers<[1], [0], [0], [1], [0, 0, 1, 1], [], []>} : vector<16x32xf32>, vector<32x32xf32>, vector<16x32xf32> -> vector<16x32xf32>
    %cst_11 = arith.constant dense<0.000000e+00> : vector<16x128xf32>
    %20 = tpu.matmul %19, %15, %cst_11 {dimension_numbers = #tpu.dot_dimension_numbers<[1], [0], [0], [1], [0, 0, 1, 1], [], []>} : vector<16x32xf32>, vector<32x128xf32>, vector<16x128xf32> -> vector<16x128xf32>
    %cst_12 = arith.constant dense<0.000000e+00> : vector<8x16xf32>
    %21 = tpu.matmul %13, %19, %cst_12 {dimension_numbers = #tpu.dot_dimension_numbers<[1], [1], [0], [0], [0, 0, 1, 0], [], []>} : vector<8x32xf32>, vector<16x32xf32>, vector<8x16xf32> -> vector<8x16xf32>
    %22 = vector.extract_strided_slice %21 {offsets = [0, 0], sizes = [1, 16], strides = [1, 1]} : vector<8x16xf32> to vector<1x16xf32>
    %23 = vector.extract_strided_slice %21 {offsets = [1, 0], sizes = [1, 16], strides = [1, 1]} : vector<8x16xf32> to vector<1x16xf32>
    %24 = vector.extract_strided_slice %21 {offsets = [2, 0], sizes = [1, 16], strides = [1, 1]} : vector<8x16xf32> to vector<1x16xf32>
    %25 = vector.extract_strided_slice %21 {offsets = [3, 0], sizes = [1, 16], strides = [1, 1]} : vector<8x16xf32> to vector<1x16xf32>
    %26 = vector.extract_strided_slice %21 {offsets = [4, 0], sizes = [1, 16], strides = [1, 1]} : vector<8x16xf32> to vector<1x16xf32>
    %27 = vector.extract_strided_slice %21 {offsets = [5, 0], sizes = [1, 16], strides = [1, 1]} : vector<8x16xf32> to vector<1x16xf32>
    %28 = vector.extract_strided_slice %21 {offsets = [6, 0], sizes = [1, 16], strides = [1, 1]} : vector<8x16xf32> to vector<1x16xf32>
    %29 = vector.extract_strided_slice %21 {offsets = [7, 0], sizes = [1, 16], strides = [1, 1]} : vector<8x16xf32> to vector<1x16xf32>
    %30 = tpu.concatenate %22, %23, %24, %25, %26, %27, %28, %29 in 1 : vector<1x16xf32>, vector<1x16xf32>, vector<1x16xf32>, vector<1x16xf32>, vector<1x16xf32>, vector<1x16xf32>, vector<1x16xf32>, vector<1x16xf32> -> vector<1x128xf32>
    %31 = vector.broadcast %30 : vector<1x128xf32> to vector<16x128xf32>
    %32 = arith.addf %20, %31 : vector<16x128xf32>
    %cst_13 = arith.constant 2.000000e-01 : f32
    %33 = vector.broadcast %cst_13 : f32 to vector<16x128xf32>
    %34 = arith.mulf %33, %32 : vector<16x128xf32>
    %35 = arith.maximumf %32, %34 : vector<16x128xf32>
    %cst_14 = arith.constant 1.000000e+00 : f32
    %36 = vector.broadcast %cst_14 : f32 to vector<16x16xf32>
    %37 = arith.subf %1, %36 : vector<16x16xf32>
    %cst_15 = arith.constant 1.000000e+30 : f32
    %38 = vector.broadcast %cst_15 : f32 to vector<16x16xf32>
    %39 = arith.mulf %37, %38 : vector<16x16xf32>
    %40 = tpu.concatenate %39, %39, %39, %39, %39, %39, %39, %39 in 1 : vector<16x16xf32>, vector<16x16xf32>, vector<16x16xf32>, vector<16x16xf32>, vector<16x16xf32>, vector<16x16xf32>, vector<16x16xf32>, vector<16x16xf32> -> vector<16x128xf32>
    %41 = arith.addf %35, %40 : vector<16x128xf32>
    %cst_16 = arith.constant dense<0xFF800000> : vector<16xf32>
    %42 = vector.multi_reduction <maximumf>, %41, %cst_16 [1] : vector<16x128xf32> to vector<16xf32>
    %43 = vector.shape_cast %42 : vector<16xf32> to vector<16x1xf32>
    %44 = vector.broadcast %43 : vector<16x1xf32> to vector<16x128xf32>
    %45 = arith.subf %41, %44 : vector<16x128xf32>
    %46 = math.exp %45 : vector<16x128xf32>
    %cst_17 = arith.constant dense<0.000000e+00> : vector<16x128xf32>
    %47 = tpu.matmul %46, %17, %cst_17 {dimension_numbers = #tpu.dot_dimension_numbers<[1], [0], [0], [1], [0, 0, 1, 1], [], []>} : vector<16x128xf32>, vector<128x128xf32>, vector<16x128xf32> -> vector<16x128xf32>
    %48 = arith.divf %46, %47 : vector<16x128xf32>
    %49 = tpu.concatenate %19, %19, %19, %19, %19, %19, %19, %19 in 0 : vector<16x32xf32>, vector<16x32xf32>, vector<16x32xf32>, vector<16x32xf32>, vector<16x32xf32>, vector<16x32xf32>, vector<16x32xf32>, vector<16x32xf32> -> vector<128x32xf32>
    %50 = arith.mulf %49, %5 : vector<128x32xf32>
    %cst_18 = arith.constant dense<0.000000e+00> : vector<16x32xf32>
    %51 = tpu.matmul %48, %50, %cst_18 {dimension_numbers = #tpu.dot_dimension_numbers<[1], [0], [0], [1], [0, 0, 1, 1], [], []>} : vector<16x128xf32>, vector<128x32xf32>, vector<16x32xf32> -> vector<16x32xf32>
    %52 = vector.broadcast %7 : vector<1x32xf32> to vector<16x32xf32>
    %53 = arith.addf %51, %52 : vector<16x32xf32>
    %54 = arith.addf %53, %0 : vector<16x32xf32>
    %cst_19 = arith.constant dense<0.000000e+00> : vector<16xf32>
    %55 = vector.multi_reduction <add>, %54, %cst_19 [1] : vector<16x32xf32> to vector<16xf32>
    %56 = vector.shape_cast %55 : vector<16xf32> to vector<16x1xf32>
    %cst_20 = arith.constant 3.200000e+01 : f32
    %57 = vector.broadcast %cst_20 : f32 to vector<16x1xf32>
    %58 = arith.divf %56, %57 : vector<16x1xf32>
    %59 = vector.broadcast %58 : vector<16x1xf32> to vector<16x32xf32>
    %60 = arith.subf %54, %59 : vector<16x32xf32>
    %61 = arith.mulf %60, %60 : vector<16x32xf32>
    %cst_21 = arith.constant dense<0.000000e+00> : vector<16xf32>
    %62 = vector.multi_reduction <add>, %61, %cst_21 [1] : vector<16x32xf32> to vector<16xf32>
    %63 = vector.shape_cast %62 : vector<16xf32> to vector<16x1xf32>
    %cst_22 = arith.constant 3.200000e+01 : f32
    %64 = vector.broadcast %cst_22 : f32 to vector<16x1xf32>
    %65 = arith.divf %63, %64 : vector<16x1xf32>
    %66 = vector.broadcast %58 : vector<16x1xf32> to vector<16x32xf32>
    %67 = arith.subf %54, %66 : vector<16x32xf32>
    %cst_23 = arith.constant 9.99999974E-6 : f32
    %68 = vector.broadcast %cst_23 : f32 to vector<16x1xf32>
    %69 = arith.addf %65, %68 : vector<16x1xf32>
    %70 = math.rsqrt %69 : vector<16x1xf32>
    %71 = vector.broadcast %70 : vector<16x1xf32> to vector<16x32xf32>
    %72 = arith.mulf %67, %71 : vector<16x32xf32>
    %73 = vector.broadcast %8 : vector<1x32xf32> to vector<16x32xf32>
    %74 = arith.mulf %72, %73 : vector<16x32xf32>
    %75 = vector.broadcast %9 : vector<1x32xf32> to vector<16x32xf32>
    %76 = arith.addf %74, %75 : vector<16x32xf32>
    %cst_24 = arith.constant dense<0.000000e+00> : vector<16x128xf32>
    %77 = tpu.matmul %76, %14, %cst_24 {dimension_numbers = #tpu.dot_dimension_numbers<[1], [0], [0], [1], [0, 0, 1, 1], [], []>} : vector<16x32xf32>, vector<32x128xf32>, vector<16x128xf32> -> vector<16x128xf32>
    %78 = vector.broadcast %6 : vector<1x128xf32> to vector<16x128xf32>
    %79 = arith.addf %77, %78 : vector<16x128xf32>
    %cst_25 = arith.constant 0.000000e+00 : f32
    %80 = vector.broadcast %cst_25 : f32 to vector<16x128xf32>
    %81 = arith.maximumf %79, %80 : vector<16x128xf32>
    %cst_26 = arith.constant dense<0.000000e+00> : vector<16x32xf32>
    %82 = tpu.matmul %81, %18, %cst_26 {dimension_numbers = #tpu.dot_dimension_numbers<[1], [0], [0], [1], [0, 0, 1, 1], [], []>} : vector<16x128xf32>, vector<128x32xf32>, vector<16x32xf32> -> vector<16x32xf32>
    %83 = vector.broadcast %10 : vector<1x32xf32> to vector<16x32xf32>
    %84 = arith.addf %82, %83 : vector<16x32xf32>
    %85 = arith.addf %84, %76 : vector<16x32xf32>
    %cst_27 = arith.constant dense<0.000000e+00> : vector<16xf32>
    %86 = vector.multi_reduction <add>, %85, %cst_27 [1] : vector<16x32xf32> to vector<16xf32>
    %87 = vector.shape_cast %86 : vector<16xf32> to vector<16x1xf32>
    %cst_28 = arith.constant 3.200000e+01 : f32
    %88 = vector.broadcast %cst_28 : f32 to vector<16x1xf32>
    %89 = arith.divf %87, %88 : vector<16x1xf32>
    %90 = vector.broadcast %89 : vector<16x1xf32> to vector<16x32xf32>
    %91 = arith.subf %85, %90 : vector<16x32xf32>
    %92 = arith.mulf %91, %91 : vector<16x32xf32>
    %cst_29 = arith.constant dense<0.000000e+00> : vector<16xf32>
    %93 = vector.multi_reduction <add>, %92, %cst_29 [1] : vector<16x32xf32> to vector<16xf32>
    %94 = vector.shape_cast %93 : vector<16xf32> to vector<16x1xf32>
    %cst_30 = arith.constant 3.200000e+01 : f32
    %95 = vector.broadcast %cst_30 : f32 to vector<16x1xf32>
    %96 = arith.divf %94, %95 : vector<16x1xf32>
    %97 = vector.broadcast %89 : vector<16x1xf32> to vector<16x32xf32>
    %98 = arith.subf %85, %97 : vector<16x32xf32>
    %cst_31 = arith.constant 9.99999974E-6 : f32
    %99 = vector.broadcast %cst_31 : f32 to vector<16x1xf32>
    %100 = arith.addf %96, %99 : vector<16x1xf32>
    %101 = math.rsqrt %100 : vector<16x1xf32>
    %102 = vector.broadcast %101 : vector<16x1xf32> to vector<16x32xf32>
    %103 = arith.mulf %98, %102 : vector<16x32xf32>
    %104 = vector.broadcast %11 : vector<1x32xf32> to vector<16x32xf32>
    %105 = arith.mulf %103, %104 : vector<16x32xf32>
    %106 = vector.broadcast %12 : vector<1x32xf32> to vector<16x32xf32>
    %107 = arith.addf %105, %106 : vector<16x32xf32>
    %c0_32 = arith.constant 0 : index
    %c0_33 = arith.constant 0 : index
    %108 = vector.load %arg6[%c0_32, %c0_33] : memref<16x32xf32, #tpu.memory_space<vmem>>, vector<16x32xf32>
    tpu.vector_store %arg6[%c0_32, %c0_33], %107 {strides = array<i32>} : memref<16x32xf32, #tpu.memory_space<vmem>>, vector<16x32xf32>,
    return
  }
}

</mosaic_0001>

<llo_original>
// kernel: gat_transformer_layer.1
$region0: #{gat_transformer_layer.1}
  #allocation0 [shape = 'u32[]', space=smem, size = 0x4, offset = 0x4, fixed_abs, tag = 'smem constant byte address 0x4 - core index']
  #allocation1 [shape = 'u32[144,128]{1,0:T(1,128)}', space=vmem, size = 0x12000, scoped, tag = 'internal scratch']
  %s0 = inlined_call_operand.vmem [shape: f32[16,32], index: 0, kind: input, shape index: {}]
  %s1 = inlined_call_operand.vmem [shape: f32[16,16], index: 1, kind: input, shape index: {}]
  %s2 = inlined_call_operand.vmem [shape: f32[16,128], index: 2, kind: input, shape index: {}]
  %s3 = inlined_call_operand.vmem [shape: f32[32,288], index: 3, kind: input, shape index: {}]
  %s4 = inlined_call_operand.vmem [shape: f32[128,160], index: 4, kind: input, shape index: {}]
  %s5 = inlined_call_operand.vmem [shape: f32[128,32], index: 5, kind: input, shape index: {}]
  %s6 = inlined_call_operand.hbm [shape: f32[16,32], index: 6, kind: output, shape index: {}]
  %s7 = sld [smem:[#allocation0]]
  $region34: #{gat_transformer_layer.1} parent=0
    _
  %s9 = ssub.s32 1, %s7
  %s10 = scalar_select 0, %s9, %s7
  $region1: #{gat_transformer_layer.1} parent=0
    #allocation2 [shape = 'u8[8192]{0}', space=vmem, size = 0x2000, scoped, tag = 'output window, operand 0, single buffered']
    #allocation3 [shape = 's32[1]{0}', space=sflag, size = 0x4, scoped, tag = 'scoped memory for gat_transformer_layer.1']
    %11 = vsyncpa [#allocation3], 0
    // Predicated region
    $region2: #{gat_transformer_layer.1} parent=1 // pred_check
      _
    $region3: #{gat_transformer_layer.1} parent=1 // pred_check_branch
      %13 = sbr.rel (0) target = $region5
    $region4: #{gat_transformer_layer.1} parent=1 // pred_region
      _
    $region5: #{gat_transformer_layer.1} parent=1 // pred_fallthru
      _
    // Predicated region
    $region6: #{gat_transformer_layer.1} parent=1 // pred_check
      _
    $region7: #{gat_transformer_layer.1} parent=1 // pred_check_branch
      %15 = sbr.rel (0) target = $region9
    $region8: #{gat_transformer_layer.1} parent=1 // pred_region
      _
    $region9: #{gat_transformer_layer.1} parent=1 // pred_fallthru
      _
    // Predicated region
    $region10: #{gat_transformer_layer.1} parent=1 // pred_check
      _
    $region11: #{gat_transformer_layer.1} parent=1 // pred_check_branch
      %17 = sbr.rel (0) target = $region13
    $region12: #{gat_transformer_layer.1} parent=1 // pred_region
      _
    $region13: #{gat_transformer_layer.1} parent=1 // pred_fallthru
      _
    // Predicated region
    $region14: #{gat_transformer_layer.1} parent=1 // pred_check
      _
    $region15: #{gat_transformer_layer.1} parent=1 // pred_check_branch
      %19 = sbr.rel (0) target = $region17
    $region16: #{gat_transformer_layer.1} parent=1 // pred_region
      _
    $region17: #{gat_transformer_layer.1} parent=1 // pred_fallthru
      _
    // Predicated region
    $region18: #{gat_transformer_layer.1} parent=1 // pred_check
      _
    $region19: #{gat_transformer_layer.1} parent=1 // pred_check_branch
      %21 = sbr.rel (0) target = $region21
    $region20: #{gat_transformer_layer.1} parent=1 // pred_region
      _
    $region21: #{gat_transformer_layer.1} parent=1 // pred_fallthru
      _
    // Predicated region
    $region22: #{gat_transformer_layer.1} parent=1 // pred_check
      _
    $region23: #{gat_transformer_layer.1} parent=1 // pred_check_branch
      %23 = sbr.rel (0) target = $region25
    $region24: #{gat_transformer_layer.1} parent=1 // pred_region
      _
    $region25: #{gat_transformer_layer.1} parent=1 // pred_fallthru
      _
    %v24 = vld [vmem:[%s0] sm:$0xff]
    %v25 = vld [vmem:[%s0 + $0x8] sm:$0xff]
    %v26 = vld [vmem:[%s1] sm:$0xff]
    %v27 = vld [vmem:[%s1 + $0x8] sm:$0xff]
    %v28 = vld [vmem:[%s2] sm:$0xff]
    %v29 = vld [vmem:[%s2 + $0x8] sm:$0xff]
    %v30 = vld [vmem:[%s3] sm:$0xff]
    %v31 = vld [vmem:[%s3 + $0x8] sm:$0xff]
    %v32 = vld [vmem:[%s3 + $0x10] sm:$0xff]
    %v33 = vld [vmem:[%s3 + $0x18] sm:$0xff]
    %v34 = vld [vmem:[%s3 + $0x20] sm:$0xff]
    %v35 = vld [vmem:[%s3 + $0x28] sm:$0xff]
    %v36 = vld [vmem:[%s3 + $0x30] sm:$0xff]
    %v37 = vld [vmem:[%s3 + $0x38] sm:$0xff]
    %v38 = vld [vmem:[%s3 + $0x40] sm:$0xff]
    %v39 = vld [vmem:[%s3 + $0x48] sm:$0xff]
    %v40 = vld [vmem:[%s3 + $0x50] sm:$0xff]
    %v41 = vld [vmem:[%s3 + $0x58] sm:$0xff]
    %v42 = vld [vmem:[%s4] sm:$0xff]
    %v43 = vld [vmem:[%s4 + $0x8] sm:$0xff]
    %v44 = vld [vmem:[%s4 + $0x10] sm:$0xff]
    %v45 = vld [vmem:[%s4 + $0x18] sm:$0xff]
    %v46 = vld [vmem:[%s4 + $0x20] sm:$0xff]
    %v47 = vld [vmem:[%s4 + $0x28] sm:$0xff]
    %v48 = vld [vmem:[%s4 + $0x30] sm:$0xff]
    %v49 = vld [vmem:[%s4 + $0x38] sm:$0xff]
    %v50 = vld [vmem:[%s4 + $0x40] sm:$0xff]
    %v51 = vld [vmem:[%s4 + $0x48] sm:$0xff]
    %v52 = vld [vmem:[%s4 + $0x50] sm:$0xff]
    %v53 = vld [vmem:[%s4 + $0x58] sm:$0xff]
    %v54 = vld [vmem:[%s4 + $0x60] sm:$0xff]
    %v55 = vld [vmem:[%s4 + $0x68] sm:$0xff]
    %v56 = vld [vmem:[%s4 + $0x70] sm:$0xff]
    %v57 = vld [vmem:[%s4 + $0x78] sm:$0xff]
    %v58 = vld [vmem:[%s4 + $0x80] sm:$0xff]
    %v59 = vld [vmem:[%s4 + $0x88] sm:$0xff]
    %v60 = vld [vmem:[%s4 + $0x90] sm:$0xff]
    %v61 = vld [vmem:[%s4 + $0x98] sm:$0xff]
    %v62 = vld [vmem:[%s4 + $0xa0] sm:$0xff]
    %v63 = vld [vmem:[%s4 + $0xa8] sm:$0xff]
    %v64 = vld [vmem:[%s4 + $0xb0] sm:$0xff]
    %v65 = vld [vmem:[%s4 + $0xb8] sm:$0xff]
    %v66 = vld [vmem:[%s4 + $0xc0] sm:$0xff]
    %v67 = vld [vmem:[%s4 + $0xc8] sm:$0xff]
    %v68 = vld [vmem:[%s4 + $0xd0] sm:$0xff]
    %v69 = vld [vmem:[%s4 + $0xd8] sm:$0xff]
    %v70 = vld [vmem:[%s4 + $0xe0] sm:$0xff]
    %v71 = vld [vmem:[%s4 + $0xe8] sm:$0xff]
    %v72 = vld [vmem:[%s4 + $0xf0] sm:$0xff]
    %v73 = vld [vmem:[%s4 + $0xf8] sm:$0xff]
    %v74 = vld [vmem:[%s5] sm:$0xff]
    %v75 = vld [vmem:[%s5 + $0x8] sm:$0xff]
    %v76 = vld [vmem:[%s5 + $0x10] sm:$0xff]
    %v77 = vld [vmem:[%s5 + $0x18] sm:$0xff]
    %v78 = vld [vmem:[%s5 + $0x20] sm:$0xff]
    %v79 = vld [vmem:[%s5 + $0x28] sm:$0xff]
    %v80 = vld [vmem:[%s5 + $0x30] sm:$0xff]
    %v81 = vld [vmem:[%s5 + $0x38] sm:$0xff]
    %v82 = vld [vmem:[%s5 + $0x40] sm:$0xff]
    %v83 = vld [vmem:[%s5 + $0x48] sm:$0xff]
    %v84 = vld [vmem:[%s5 + $0x50] sm:$0xff]
    %v85 = vld [vmem:[%s5 + $0x58] sm:$0xff]
    %v86 = vld [vmem:[%s5 + $0x60] sm:$0xff]
    %v87 = vld [vmem:[%s5 + $0x68] sm:$0xff]
    %v88 = vld [vmem:[%s5 + $0x70] sm:$0xff]
    %v89 = vld [vmem:[%s5 + $0x78] sm:$0xff]
    %vm90 = vcmask 261120
    %v92 = vsel %vm90, %v24, 0
    %v95 = vsel %vm90, %v25, 0
    %97 = vmatprep.subr.mxu0 0.0
    %98 = vmatpush1.msra.mxu0 %v32
    %99 = vmatprep.subr.mxu0 0.0
    %100 = vmatpush1.msra.mxu0 %v35
    %101 = vmatprep.subr.mxu0 0.0
    %102 = vmatpush1.msra.mxu0 %v38
    %103 = vmatprep.subr.mxu0 0.0
    %104 = vmatpush1.msra.mxu0 %v41
    %105 = vmatprep.subr.mxu0 0.0
    %106 = vmatpush1.msra.mxu0 0.0
    %107 = vmatprep.subr.mxu0 0.0
    %108 = vmatpush1.msra.mxu0 0.0
    %109 = vmatprep.subr.mxu0 0.0
    %110 = vmatpush1.msra.mxu0 0.0
    %111 = vmatprep.subr.mxu0 0.0
    %112 = vmatpush1.msra.mxu0 0.0
    %113 = vmatprep.subr.mxu0 0.0
    %114 = vmatpush1.msra.mxu0 0.0
    %115 = vmatprep.subr.mxu0 0.0
    %116 = vmatpush1.msra.mxu0 0.0
    %117 = vmatprep.subr.mxu0 0.0
    %118 = vmatpush1.msra.mxu0 0.0
    %119 = vmatprep.subr.mxu0 0.0
    %120 = vmatpush1.msra.mxu0 0.0
    %121 = vmatprep.subr.mxu0 0.0
    %122 = vmatpush1.msra.mxu0 0.0
    %123 = vmatprep.subr.mxu0 0.0
    %124 = vmatpush1.msra.mxu0 0.0
    %125 = vmatprep.subr.mxu0 0.0
    %126 = vmatpush1.msra.mxu0 0.0
    %127 = vmatprep.subr.mxu0 0.0
    %128 = vmatpush1.msra.mxu0 0.0
    %129 = vmatprep.subr.mxu0 0.0
    %130 = vmatpush1.msra.mxu0 0.0
    %131 = vmatprep.subr.mxu0 0.0
    %132 = vmatpush1.msra.mxu0 0.0
    %133 = vmatprep.subr.mxu0 0.0
    %134 = vmatpush1.msra.mxu0 0.0
    %135 = vmatprep.subr.mxu0 0.0
    %136 = vmatpush1.msra.mxu0 0.0
    %137 = vmatprep.subr.mxu0 0.0
    %138 = vmatpush1.msra.mxu0 0.0
    %139 = vmatprep.subr.mxu0 0.0
    %140 = vmatpush1.msra.mxu0 0.0
    %141 = vmatprep.subr.mxu0 0.0
    %142 = vmatpush1.msra.mxu0 0.0
    %143 = vmatprep.subr.mxu0 0.0
    %144 = vmatpush1.msra.mxu0 0.0
    %145 = vmatprep.subr.mxu0 0.0
    %146 = vmatpush1.msra.mxu0 0.0
    %147 = vmatprep.subr.mxu0 0.0
    %148 = vmatpush1.msra.mxu0 0.0
    %149 = vmatprep.subr.mxu0 0.0
    %150 = vmatpush1.msra.mxu0 0.0
    %151 = vmatprep.subr.mxu0 0.0
    %152 = vmatpush1.msra.mxu0 0.0
    %153 = vmatprep.subr.mxu0 0.0
    %154 = vmatpush1.msra.mxu0 0.0
    %155 = vmatprep.subr.mxu0 0.0
    %156 = vmatpush1.msra.mxu0 0.0
    %157 = vmatprep.subr.mxu0 0.0
    %158 = vmatpush1.msra.mxu0 0.0
    %159 = vmatprep.subr.mxu0 0.0
    %160 = vmatpush1.msra.mxu0 0.0
    %161 = vmatprep.mubr.f32.mxu0 0.0
    %162 = vmatmul.mubr.f32.gmra.mrb[0].mxu0 %v92
    %v163 = vpop.f32.mrb[0].mxu0
    %v164 = vadd.f32 0.0, %v163
    %v165 = vpop.f32.mrb[0].mxu0
    %166 = vmatprep.mubr.f32.mxu0 0.0
    %167 = vmatmul.mubr.f32.gmra.mrb[0].mxu0 %v95
    %v168 = vpop.f32.mrb[0].mxu0
    %v169 = vadd.f32 0.0, %v168
    %v170 = vpop.f32.mrb[0].mxu0
    %171 = vdwg.mxu0
    %v173 = vsel %vm90, %v29, 0
    %v176 = vsel %vm90, %v164, 0
    %v179 = vsel %vm90, %v169, 0
    %181 = vmatprep.subr.mxu0 0.0
    %182 = vmatpush1.xpose.msra.mxu0 %v176
    %183 = vmatprep.subr.mxu0 0.0
    %184 = vmatpush1.xpose.msra.mxu0 %v179
    %185 = vmatprep.subr.mxu0 0.0
    %186 = vmatpush1.xpose.msra.mxu0 0.0
    %187 = vmatprep.subr.mxu0 0.0
    %188 = vmatpush1.xpose.msra.mxu0 0.0
    %189 = vmatprep.subr.mxu0 0.0
    %190 = vmatpush1.xpose.msra.mxu0 0.0
    %191 = vmatprep.subr.mxu0 0.0
    %192 = vmatpush1.xpose.msra.mxu0 0.0
    %193 = vmatprep.subr.mxu0 0.0
    %194 = vmatpush1.xpose.msra.mxu0 0.0
    %195 = vmatprep.subr.mxu0 0.0
    %196 = vmatpush1.xpose.msra.mxu0 0.0
    %197 = vmatprep.subr.mxu0 0.0
    %198 = vmatpush1.xpose.msra.mxu0 0.0
    %199 = vmatprep.subr.mxu0 0.0
    %200 = vmatpush1.xpose.msra.mxu0 0.0
    %201 = vmatprep.subr.mxu0 0.0
    %202 = vmatpush1.xpose.msra.mxu0 0.0
    %203 = vmatprep.subr.mxu0 0.0
    %204 = vmatpush1.xpose.msra.mxu0 0.0
    %205 = vmatprep.subr.mxu0 0.0
    %206 = vmatpush1.xpose.msra.mxu0 0.0
    %207 = vmatprep.subr.mxu0 0.0
    %208 = vmatpush1.xpose.msra.mxu0 0.0
    %209 = vmatprep.subr.mxu0 0.0
    %210 = vmatpush1.xpose.msra.mxu0 0.0
    %211 = vmatprep.subr.mxu0 0.0
    %212 = vmatpush1.xpose.msra.mxu0 0.0
    %213 = vmatprep.subr.mxu0 0.0
    %214 = vmatpush1.xpose.msra.mxu0 0.0
    %215 = vmatprep.subr.mxu0 0.0
    %216 = vmatpush1.xpose.msra.mxu0 0.0
    %217 = vmatprep.subr.mxu0 0.0
    %218 = vmatpush1.xpose.msra.mxu0 0.0
    %219 = vmatprep.subr.mxu0 0.0
    %220 = vmatpush1.xpose.msra.mxu0 0.0
    %221 = vmatprep.subr.mxu0 0.0
    %222 = vmatpush1.xpose.msra.mxu0 0.0
    %223 = vmatprep.subr.mxu0 0.0
    %224 = vmatpush1.xpose.msra.mxu0 0.0
    %225 = vmatprep.subr.mxu0 0.0
    %226 = vmatpush1.xpose.msra.mxu0 0.0
    %227 = vmatprep.subr.mxu0 0.0
    %228 = vmatpush1.xpose.msra.mxu0 0.0
    %229 = vmatprep.subr.mxu0 0.0
    %230 = vmatpush1.xpose.msra.mxu0 0.0
    %231 = vmatprep.subr.mxu0 0.0
    %232 = vmatpush1.xpose.msra.mxu0 0.0
    %233 = vmatprep.subr.mxu0 0.0
    %234 = vmatpush1.xpose.msra.mxu0 0.0
    %235 = vmatprep.subr.mxu0 0.0
    %236 = vmatpush1.xpose.msra.mxu0 0.0
    %237 = vmatprep.subr.mxu0 0.0
    %238 = vmatpush1.xpose.msra.mxu0 0.0
    %239 = vmatprep.subr.mxu0 0.0
    %240 = vmatpush1.xpose.msra.mxu0 0.0
    %241 = vmatprep.subr.mxu0 0.0
    %242 = vmatpush1.xpose.msra.mxu0 0.0
    %243 = vmatprep.subr.mxu0 0.0
    %244 = vmatpush1.xpose.msra.mxu0 0.0
    %245 = vmatprep.mubr.f32.mxu0 0.0
    %246 = vmatmul.mubr.f32.gmra.mrb[0].mxu0 %v173
    %v247 = vpop.f32.mrb[0].mxu0
    %v248 = vadd.f32 0.0, %v247
    %v249 = vpop.f32.mrb[0].mxu0
    %250 = vdwg.mxu0
    %v252 = vrot.slane %v248, 1
    %253 = vrot.lane.b32.xlu0 %v252, 16
    %v254 = vpop.permute.xlu0 %253
    %v256 = vrot.slane %v248, 2
    %257 = vrot.lane.b32.xlu0 %v256, 32
    %v258 = vpop.permute.xlu0 %257
    %v260 = vrot.slane %v248, 3
    %261 = vrot.lane.b32.xlu0 %v260, 48
    %v262 = vpop.permute.xlu0 %261
    %v264 = vrot.slane %v248, 4
    %265 = vrot.lane.b32.xlu0 %v264, 64
    %v266 = vpop.permute.xlu0 %265
    %v268 = vrot.slane %v248, 5
    %269 = vrot.lane.b32.xlu0 %v268, 80
    %v270 = vpop.permute.xlu0 %269
    %v272 = vrot.slane %v248, 6
    %273 = vrot.lane.b32.xlu0 %v272, 96
    %v274 = vpop.permute.xlu0 %273
    %v276 = vrot.slane %v248, 7
    %277 = vrot.lane.b32.xlu0 %v276, 112
    %v278 = vpop.permute.xlu0 %277
    %vm280 = vcmask 130048
    %v281 = vsel %vm280, %v248, %v254
    %v282 = vsel %vm90, %v281, %v258
    %vm283 = vcmask 392192
    %v284 = vsel %vm283, %v282, %v262
    %vm285 = vcmask 523264
    %v286 = vsel %vm285, %v284, %v266
    %vm287 = vcmask 654336
    %v288 = vsel %vm287, %v286, %v270
    %vm289 = vcmask 785408
    %v290 = vsel %vm289, %v288, %v274
    %vm291 = vcmask 916480
    %v292 = vsel %vm291, %v290, %v278
    %v293 = vlaneseq
    %v294 = vshrl.u32 %v293, 7
    %v295 = vsub.s32 0, %v294
    %v296 = vrot.slane %v292, %v295
    %297 = vmatprep.subr.mxu0 0.0
    %298 = vmatpush1.msra.mxu0 %v31
    %299 = vmatprep.subr.mxu0 0.0
    %300 = vmatpush1.msra.mxu0 %v34
    %301 = vmatprep.subr.mxu0 0.0
    %302 = vmatpush1.msra.mxu0 %v37
    %303 = vmatprep.subr.mxu0 0.0
    %304 = vmatpush1.msra.mxu0 %v40
    %305 = vmatprep.subr.mxu0 0.0
    %306 = vmatpush1.msra.mxu0 0.0
    %307 = vmatprep.subr.mxu0 0.0
    %308 = vmatpush1.msra.mxu0 0.0
    %309 = vmatprep.subr.mxu0 0.0
    %310 = vmatpush1.msra.mxu0 0.0
    %311 = vmatprep.subr.mxu0 0.0
    %312 = vmatpush1.msra.mxu0 0.0
    %313 = vmatprep.subr.mxu0 0.0
    %314 = vmatpush1.msra.mxu0 0.0
    %315 = vmatprep.subr.mxu0 0.0
    %316 = vmatpush1.msra.mxu0 0.0
    %317 = vmatprep.subr.mxu0 0.0
    %318 = vmatpush1.msra.mxu0 0.0
    %319 = vmatprep.subr.mxu0 0.0
    %320 = vmatpush1.msra.mxu0 0.0
    %321 = vmatprep.subr.mxu0 0.0
    %322 = vmatpush1.msra.mxu0 0.0
    %323 = vmatprep.subr.mxu0 0.0
    %324 = vmatpush1.msra.mxu0 0.0
    %325 = vmatprep.subr.mxu0 0.0
    %326 = vmatpush1.msra.mxu0 0.0
    %327 = vmatprep.subr.mxu0 0.0
    %328 = vmatpush1.msra.mxu0 0.0
    %329 = vmatprep.subr.mxu0 0.0
    %330 = vmatpush1.msra.mxu0 0.0
    %331 = vmatprep.subr.mxu0 0.0
    %332 = vmatpush1.msra.mxu0 0.0
    %333 = vmatprep.subr.mxu0 0.0
    %334 = vmatpush1.msra.mxu0 0.0
    %335 = vmatprep.subr.mxu0 0.0
    %336 = vmatpush1.msra.mxu0 0.0
    %337 = vmatprep.subr.mxu0 0.0
    %338 = vmatpush1.msra.mxu0 0.0
    %339 = vmatprep.subr.mxu0 0.0
    %340 = vmatpush1.msra.mxu0 0.0
    %341 = vmatprep.subr.mxu0 0.0
    %342 = vmatpush1.msra.mxu0 0.0
    %343 = vmatprep.subr.mxu0 0.0
    %344 = vmatpush1.msra.mxu0 0.0
    %345 = vmatprep.subr.mxu0 0.0
    %346 = vmatpush1.msra.mxu0 0.0
    %347 = vmatprep.subr.mxu0 0.0
    %348 = vmatpush1.msra.mxu0 0.0
    %349 = vmatprep.subr.mxu0 0.0
    %350 = vmatpush1.msra.mxu0 0.0
    %351 = vmatprep.subr.mxu0 0.0
    %352 = vmatpush1.msra.mxu0 0.0
    %353 = vmatprep.subr.mxu0 0.0
    %354 = vmatpush1.msra.mxu0 0.0
    %355 = vmatprep.subr.mxu0 0.0
    %356 = vmatpush1.msra.mxu0 0.0
    %357 = vmatprep.subr.mxu0 0.0
    %358 = vmatpush1.msra.mxu0 0.0
    %359 = vmatprep.subr.mxu0 0.0
    %360 = vmatpush1.msra.mxu0 0.0
    %361 = vmatprep.mubr.f32.mxu0 0.0
    %362 = vmatmul.mubr.f32.gmra.mrb[0].mxu0 %v176
    %v363 = vpop.f32.mrb[0].mxu0
    %v364 = vadd.f32 %v296, %v363
    %v365 = vpop.f32.mrb[0].mxu0
    %366 = vmatprep.mubr.f32.mxu0 0.0
    %367 = vmatmul.mubr.f32.gmra.mrb[0].mxu0 %v179
    %v368 = vpop.f32.mrb[0].mxu0
    %v369 = vadd.f32 %v296, %v368
    %v370 = vpop.f32.mrb[0].mxu0
    %371 = vdwg.mxu0
    %v372 = vmul.f32 %v364, 0.2
    %v373 = vmul.f32 %v369, 0.2
    %v374 = vmax.f32 %v364, %v372
    %v375 = vmax.f32 %v369, %v373
    %v376 = vsub.f32 %v26, 1.0
    %v377 = vsub.f32 %v27, 1.0
    %v378 = vmul.f32 %v376, 1e+30
    %v379 = vmul.f32 %v377, 1e+30
    %382 = vrot.lane.b32.xlu0 %v378, 16
    %v383 = vpop.permute.xlu0 %382
    %384 = vrot.lane.b32.xlu0 %v379, 16
    %v385 = vpop.permute.xlu0 %384
    %388 = vrot.lane.b32.xlu0 %v378, 32
    %v389 = vpop.permute.xlu0 %388
    %390 = vrot.lane.b32.xlu0 %v379, 32
    %v391 = vpop.permute.xlu0 %390
    %394 = vrot.lane.b32.xlu0 %v378, 48
    %v395 = vpop.permute.xlu0 %394
    %396 = vrot.lane.b32.xlu0 %v379, 48
    %v397 = vpop.permute.xlu0 %396
    %400 = vrot.lane.b32.xlu0 %v378, 64
    %v401 = vpop.permute.xlu0 %400
    %402 = vrot.lane.b32.xlu0 %v379, 64
    %v403 = vpop.permute.xlu0 %402
    %406 = vrot.lane.b32.xlu0 %v378, 80
    %v407 = vpop.permute.xlu0 %406
    %408 = vrot.lane.b32.xlu0 %v379, 80
    %v409 = vpop.permute.xlu0 %408
    %412 = vrot.lane.b32.xlu0 %v378, 96
    %v413 = vpop.permute.xlu0 %412
    %414 = vrot.lane.b32.xlu0 %v379, 96
    %v415 = vpop.permute.xlu0 %414
    %418 = vrot.lane.b32.xlu0 %v378, 112
    %v419 = vpop.permute.xlu0 %418
    %420 = vrot.lane.b32.xlu0 %v379, 112
    %v421 = vpop.permute.xlu0 %420
    %v424 = vsel %vm280, %v378, %v383
    %v425 = vsel %vm280, %v379, %v385
    %v426 = vsel %vm90, %v424, %v389
    %v427 = vsel %vm90, %v425, %v391
    %v428 = vsel %vm283, %v426, %v395
    %v429 = vsel %vm283, %v427, %v397
    %v430 = vsel %vm285, %v428, %v401
    %v431 = vsel %vm285, %v429, %v403
    %v432 = vsel %vm287, %v430, %v407
    %v433 = vsel %vm287, %v431, %v409
    %v434 = vsel %vm289, %v432, %v413
    %v435 = vsel %vm289, %v433, %v415
    %v436 = vsel %vm291, %v434, %v419
    %v437 = vsel %vm291, %v435, %v421
    %v438 = vadd.f32 %v374, %v436
    %v439 = vadd.f32 %v375, %v437
    %440 = vmax.xlane.f32.xlu0 %v438
    %v441 = vpop.xlane.xlu0 %440
    %442 = vmax.xlane.f32.xlu0 %v439
    %v443 = vpop.xlane.xlu0 %442
    %v444 = vsub.f32 %v438, %v441
    %v445 = vsub.f32 %v439, %v443
    %v446 = vmul.f32 %v444, 1.442695
    %v447 = vpow.pop %v446
    %v448 = vmul.f32 %v445, 1.442695
    %v449 = vpow.pop %v448
    %450 = vmatprep.subr.mxu0 0.0
    %451 = vmatpush1.msra.mxu0 %v42
    %452 = vmatprep.subr.mxu0 0.0
    %453 = vmatpush1.msra.mxu0 %v44
    %454 = vmatprep.subr.mxu0 0.0
    %455 = vmatpush1.msra.mxu0 %v46
    %456 = vmatprep.subr.mxu0 0.0
    %457 = vmatpush1.msra.mxu0 %v48
    %458 = vmatprep.subr.mxu0 0.0
    %459 = vmatpush1.msra.mxu0 %v50
    %460 = vmatprep.subr.mxu0 0.0
    %461 = vmatpush1.msra.mxu0 %v52
    %462 = vmatprep.subr.mxu0 0.0
    %463 = vmatpush1.msra.mxu0 %v54
    %464 = vmatprep.subr.mxu0 0.0
    %465 = vmatpush1.msra.mxu0 %v56
    %466 = vmatprep.subr.mxu0 0.0
    %467 = vmatpush1.msra.mxu0 %v58
    %468 = vmatprep.subr.mxu0 0.0
    %469 = vmatpush1.msra.mxu0 %v60
    %470 = vmatprep.subr.mxu0 0.0
    %471 = vmatpush1.msra.mxu0 %v62
    %472 = vmatprep.subr.mxu0 0.0
    %473 = vmatpush1.msra.mxu0 %v64
    %474 = vmatprep.subr.mxu0 0.0
    %475 = vmatpush1.msra.mxu0 %v66
    %476 = vmatprep.subr.mxu0 0.0
    %477 = vmatpush1.msra.mxu0 %v68
    %478 = vmatprep.subr.mxu0 0.0
    %479 = vmatpush1.msra.mxu0 %v70
    %480 = vmatprep.subr.mxu0 0.0
    %481 = vmatpush1.msra.mxu0 %v72
    %482 = vmatprep.subr.mxu0 0.0
    %483 = vmatpush1.msra.mxu0 0.0
    %484 = vmatprep.subr.mxu0 0.0
    %485 = vmatpush1.msra.mxu0 0.0
    %486 = vmatprep.subr.mxu0 0.0
    %487 = vmatpush1.msra.mxu0 0.0
    %488 = vmatprep.subr.mxu0 0.0
    %489 = vmatpush1.msra.mxu0 0.0
    %490 = vmatprep.subr.mxu0 0.0
    %491 = vmatpush1.msra.mxu0 0.0
    %492 = vmatprep.subr.mxu0 0.0
    %493 = vmatpush1.msra.mxu0 0.0
    %494 = vmatprep.subr.mxu0 0.0
    %495 = vmatpush1.msra.mxu0 0.0
    %496 = vmatprep.subr.mxu0 0.0
    %497 = vmatpush1.msra.mxu0 0.0
    %498 = vmatprep.subr.mxu0 0.0
    %499 = vmatpush1.msra.mxu0 0.0
    %500 = vmatprep.subr.mxu0 0.0
    %501 = vmatpush1.msra.mxu0 0.0
    %502 = vmatprep.subr.mxu0 0.0
    %503 = vmatpush1.msra.mxu0 0.0
    %504 = vmatprep.subr.mxu0 0.0
    %505 = vmatpush1.msra.mxu0 0.0
    %506 = vmatprep.subr.mxu0 0.0
    %507 = vmatpush1.msra.mxu0 0.0
    %508 = vmatprep.subr.mxu0 0.0
    %509 = vmatpush1.msra.mxu0 0.0
    %510 = vmatprep.subr.mxu0 0.0
    %511 = vmatpush1.msra.mxu0 0.0
    %512 = vmatprep.subr.mxu0 0.0
    %513 = vmatpush1.msra.mxu0 0.0
    %514 = vmatprep.mubr.f32.mxu0 0.0
    %515 = vmatmul.mubr.f32.gmra.mrb[0].mxu0 %v447
    %v516 = vpop.f32.mrb[0].mxu0
    %v517 = vadd.f32 0.0, %v516
    %v518 = vpop.f32.mrb[0].mxu0
    %519 = vmatprep.mubr.f32.mxu0 0.0
    %520 = vmatmul.mubr.f32.gmra.mrb[0].mxu0 %v449
    %v521 = vpop.f32.mrb[0].mxu0
    %v522 = vadd.f32 0.0, %v521
    %v523 = vpop.f32.mrb[0].mxu0
    %524 = vdwg.mxu0
    %v525 = vrcp.pop %v517
    %v526 = vmul.f32 %v447, %v525
    %v527 = vrcp.pop %v522
    %v528 = vmul.f32 %v449, %v527
    %v529 = vmul.f32 %v164, %v74
    %v530 = vmul.f32 %v169, %v75
    %v531 = vmul.f32 %v164, %v76
    %v532 = vmul.f32 %v169, %v77
    %v533 = vmul.f32 %v164, %v78
    %v534 = vmul.f32 %v169, %v79
    %v535 = vmul.f32 %v164, %v80
    %v536 = vmul.f32 %v169, %v81
    %v537 = vmul.f32 %v164, %v82
    %v538 = vmul.f32 %v169, %v83
    %v539 = vmul.f32 %v164, %v84
    %v540 = vmul.f32 %v169, %v85
    %v541 = vmul.f32 %v164, %v86
    %v542 = vmul.f32 %v169, %v87
    %v543 = vmul.f32 %v164, %v88
    %v544 = vmul.f32 %v169, %v89
    %v545 = vlaneseq
    %v546 = vshrl.u32 %v545, 7
    %v547 = vsub.s32 1, %v546
    %v548 = vrot.slane %v28, %v547
    %549 = vmatprep.subr.mxu0 0.0
    %550 = vmatpush1.msra.mxu0 %v529
    %551 = vmatprep.subr.mxu0 0.0
    %552 = vmatpush1.msra.mxu0 %v530
    %553 = vmatprep.subr.mxu0 0.0
    %554 = vmatpush1.msra.mxu0 %v531
    %555 = vmatprep.subr.mxu0 0.0
    %556 = vmatpush1.msra.mxu0 %v532
    %557 = vmatprep.subr.mxu0 0.0
    %558 = vmatpush1.msra.mxu0 %v533
    %559 = vmatprep.subr.mxu0 0.0
    %560 = vmatpush1.msra.mxu0 %v534
    %561 = vmatprep.subr.mxu0 0.0
    %562 = vmatpush1.msra.mxu0 %v535
    %563 = vmatprep.subr.mxu0 0.0
    %564 = vmatpush1.msra.mxu0 %v536
    %565 = vmatprep.subr.mxu0 0.0
    %566 = vmatpush1.msra.mxu0 %v537
    %567 = vmatprep.subr.mxu0 0.0
    %568 = vmatpush1.msra.mxu0 %v538
    %569 = vmatprep.subr.mxu0 0.0
    %570 = vmatpush1.msra.mxu0 %v539
    %571 = vmatprep.subr.mxu0 0.0
    %572 = vmatpush1.msra.mxu0 %v540
    %573 = vmatprep.subr.mxu0 0.0
    %574 = vmatpush1.msra.mxu0 %v541
    %575 = vmatprep.subr.mxu0 0.0
    %576 = vmatpush1.msra.mxu0 %v542
    %577 = vmatprep.subr.mxu0 0.0
    %578 = vmatpush1.msra.mxu0 %v543
    %579 = vmatprep.subr.mxu0 0.0
    %580 = vmatpush1.msra.mxu0 %v544
    %581 = vmatprep.subr.mxu0 0.0
    %582 = vmatpush1.msra.mxu0 0.0
    %583 = vmatprep.subr.mxu0 0.0
    %584 = vmatpush1.msra.mxu0 0.0
    %585 = vmatprep.subr.mxu0 0.0
    %586 = vmatpush1.msra.mxu0 0.0
    %587 = vmatprep.subr.mxu0 0.0
    %588 = vmatpush1.msra.mxu0 0.0
    %589 = vmatprep.subr.mxu0 0.0
    %590 = vmatpush1.msra.mxu0 0.0
    %591 = vmatprep.subr.mxu0 0.0
    %592 = vmatpush1.msra.mxu0 0.0
    %593 = vmatprep.subr.mxu0 0.0
    %594 = vmatpush1.msra.mxu0 0.0
    %595 = vmatprep.subr.mxu0 0.0
    %596 = vmatpush1.msra.mxu0 0.0
    %597 = vmatprep.subr.mxu0 0.0
    %598 = vmatpush1.msra.mxu0 0.0
    %599 = vmatprep.subr.mxu0 0.0
    %600 = vmatpush1.msra.mxu0 0.0
    %601 = vmatprep.subr.mxu0 0.0
    %602 = vmatpush1.msra.mxu0 0.0
    %603 = vmatprep.subr.mxu0 0.0
    %604 = vmatpush1.msra.mxu0 0.0
    %605 = vmatprep.subr.mxu0 0.0
    %606 = vmatpush1.msra.mxu0 0.0
    %607 = vmatprep.subr.mxu0 0.0
    %608 = vmatpush1.msra.mxu0 0.0
    %609 = vmatprep.subr.mxu0 0.0
    %610 = vmatpush1.msra.mxu0 0.0
    %611 = vmatprep.subr.mxu0 0.0
    %612 = vmatpush1.msra.mxu0 0.0
    %613 = vmatprep.mubr.f32.mxu0 0.0
    %614 = vmatmul.mubr.f32.gmra.mrb[0].mxu0 %v526
    %v615 = vpop.f32.mrb[0].mxu0
    %v616 = vadd.f32 %v548, %v615
    %v617 = vpop.f32.mrb[0].mxu0
    %618 = vmatprep.mubr.f32.mxu0 0.0
    %619 = vmatmul.mubr.f32.gmra.mrb[0].mxu0 %v528
    %v620 = vpop.f32.mrb[0].mxu0
    %v621 = vadd.f32 %v548, %v620
    %v622 = vpop.f32.mrb[0].mxu0
    %623 = vdwg.mxu0
    %v624 = vadd.f32 %v616, %v24
    %v625 = vadd.f32 %v621, %v25
    %v626 = vsel %vm90, %v624, 0.0
    %627 = vadd.xlane.f32.xlu0 %v626
    %v628 = vpop.xlane.xlu0 %627
    %v629 = vsel %vm90, %v625, 0.0
    %630 = vadd.xlane.f32.xlu0 %v629
    %v631 = vpop.xlane.xlu0 %630
    %v632 = vrcp.pop 32.0
    %v633 = vmul.f32 %v628, %v632
    %v634 = vmul.f32 %v631, %v632
    %v635 = vsub.f32 %v624, %v633
    %v636 = vsub.f32 %v625, %v634
    %v637 = vmul.f32 %v635, %v635
    %v638 = vmul.f32 %v636, %v636
    %v639 = vsel %vm90, %v637, 0.0
    %640 = vadd.xlane.f32.xlu0 %v639
    %v641 = vpop.xlane.xlu0 %640
    %v642 = vsel %vm90, %v638, 0.0
    %643 = vadd.xlane.f32.xlu0 %v642
    %v644 = vpop.xlane.xlu0 %643
    %v645 = vmul.f32 %v641, %v632
    %v646 = vmul.f32 %v644, %v632
    %v647 = vadd.f32 %v645, 1e-05
    %v648 = vadd.f32 %v646, 1e-05
    %v649 = vrsqrt.pop %v647
    %v650 = vrsqrt.pop %v648
    %v651 = vmul.f32 %v635, %v649
    %v652 = vmul.f32 %v636, %v650
    %v653 = vlaneseq
    %v654 = vshrl.u32 %v653, 7
    %v655 = vsub.s32 2, %v654
    %v656 = vrot.slane %v28, %v655
    %v657 = vmul.f32 %v651, %v656
    %v658 = vmul.f32 %v652, %v656
    %v659 = vlaneseq
    %v660 = vshrl.u32 %v659, 7
    %v661 = vsub.s32 3, %v660
    %v662 = vrot.slane %v28, %v661
    %v663 = vadd.f32 %v657, %v662
    %v664 = vadd.f32 %v658, %v662
    %v665 = vlaneseq
    %v666 = vshrl.u32 %v665, 7
    %v667 = vsub.s32 0, %v666
    %v668 = vrot.slane %v28, %v667
    %v670 = vsel %vm90, %v663, 0
    %v673 = vsel %vm90, %v664, 0
    %675 = vmatprep.subr.mxu0 0.0
    %676 = vmatpush1.msra.mxu0 %v30
    %677 = vmatprep.subr.mxu0 0.0
    %678 = vmatpush1.msra.mxu0 %v33
    %679 = vmatprep.subr.mxu0 0.0
    %680 = vmatpush1.msra.mxu0 %v36
    %681 = vmatprep.subr.mxu0 0.0
    %682 = vmatpush1.msra.mxu0 %v39
    %683 = vmatprep.subr.mxu0 0.0
    %684 = vmatpush1.msra.mxu0 0.0
    %685 = vmatprep.subr.mxu0 0.0
    %686 = vmatpush1.msra.mxu0 0.0
    %687 = vmatprep.subr.mxu0 0.0
    %688 = vmatpush1.msra.mxu0 0.0
    %689 = vmatprep.subr.mxu0 0.0
    %690 = vmatpush1.msra.mxu0 0.0
    %691 = vmatprep.subr.mxu0 0.0
    %692 = vmatpush1.msra.mxu0 0.0
    %693 = vmatprep.subr.mxu0 0.0
    %694 = vmatpush1.msra.mxu0 0.0
    %695 = vmatprep.subr.mxu0 0.0
    %696 = vmatpush1.msra.mxu0 0.0
    %697 = vmatprep.subr.mxu0 0.0
    %698 = vmatpush1.msra.mxu0 0.0
    %699 = vmatprep.subr.mxu0 0.0
    %700 = vmatpush1.msra.mxu0 0.0
    %701 = vmatprep.subr.mxu0 0.0
    %702 = vmatpush1.msra.mxu0 0.0
    %703 = vmatprep.subr.mxu0 0.0
    %704 = vmatpush1.msra.mxu0 0.0
    %705 = vmatprep.subr.mxu0 0.0
    %706 = vmatpush1.msra.mxu0 0.0
    %707 = vmatprep.subr.mxu0 0.0
    %708 = vmatpush1.msra.mxu0 0.0
    %709 = vmatprep.subr.mxu0 0.0
    %710 = vmatpush1.msra.mxu0 0.0
    %711 = vmatprep.subr.mxu0 0.0
    %712 = vmatpush1.msra.mxu0 0.0
    %713 = vmatprep.subr.mxu0 0.0
    %714 = vmatpush1.msra.mxu0 0.0
    %715 = vmatprep.subr.mxu0 0.0
    %716 = vmatpush1.msra.mxu0 0.0
    %717 = vmatprep.subr.mxu0 0.0
    %718 = vmatpush1.msra.mxu0 0.0
    %719 = vmatprep.subr.mxu0 0.0
    %720 = vmatpush1.msra.mxu0 0.0
    %721 = vmatprep.subr.mxu0 0.0
    %722 = vmatpush1.msra.mxu0 0.0
    %723 = vmatprep.subr.mxu0 0.0
    %724 = vmatpush1.msra.mxu0 0.0
    %725 = vmatprep.subr.mxu0 0.0
    %726 = vmatpush1.msra.mxu0 0.0
    %727 = vmatprep.subr.mxu0 0.0
    %728 = vmatpush1.msra.mxu0 0.0
    %729 = vmatprep.subr.mxu0 0.0
    %730 = vmatpush1.msra.mxu0 0.0
    %731 = vmatprep.subr.mxu0 0.0
    %732 = vmatpush1.msra.mxu0 0.0
    %733 = vmatprep.subr.mxu0 0.0
    %734 = vmatpush1.msra.mxu0 0.0
    %735 = vmatprep.subr.mxu0 0.0
    %736 = vmatpush1.msra.mxu0 0.0
    %737 = vmatprep.subr.mxu0 0.0
    %738 = vmatpush1.msra.mxu0 0.0
    %739 = vmatprep.mubr.f32.mxu0 0.0
    %740 = vmatmul.mubr.f32.gmra.mrb[0].mxu0 %v670
    %v741 = vpop.f32.mrb[0].mxu0
    %v742 = vadd.f32 %v668, %v741
    %v743 = vpop.f32.mrb[0].mxu0
    %744 = vmatprep.mubr.f32.mxu0 0.0
    %745 = vmatmul.mubr.f32.gmra.mrb[0].mxu0 %v673
    %v746 = vpop.f32.mrb[0].mxu0
    %v747 = vadd.f32 %v668, %v746
    %v748 = vpop.f32.mrb[0].mxu0
    %749 = vdwg.mxu0
    %v750 = vmax.f32 %v742, 0.0
    %v751 = vmax.f32 %v747, 0.0
    %v752 = vlaneseq
    %v753 = vshrl.u32 %v752, 7
    %v754 = vsub.s32 4, %v753
    %v755 = vrot.slane %v28, %v754
    %756 = vmatprep.subr.mxu0 0.0
    %757 = vmatpush1.msra.mxu0 %v43
    %758 = vmatprep.subr.mxu0 0.0
    %759 = vmatpush1.msra.mxu0 %v45
    %760 = vmatprep.subr.mxu0 0.0
    %761 = vmatpush1.msra.mxu0 %v47
    %762 = vmatprep.subr.mxu0 0.0
    %763 = vmatpush1.msra.mxu0 %v49
    %764 = vmatprep.subr.mxu0 0.0
    %765 = vmatpush1.msra.mxu0 %v51
    %766 = vmatprep.subr.mxu0 0.0
    %767 = vmatpush1.msra.mxu0 %v53
    %768 = vmatprep.subr.mxu0 0.0
    %769 = vmatpush1.msra.mxu0 %v55
    %770 = vmatprep.subr.mxu0 0.0
    %771 = vmatpush1.msra.mxu0 %v57
    %772 = vmatprep.subr.mxu0 0.0
    %773 = vmatpush1.msra.mxu0 %v59
    %774 = vmatprep.subr.mxu0 0.0
    %775 = vmatpush1.msra.mxu0 %v61
    %776 = vmatprep.subr.mxu0 0.0
    %777 = vmatpush1.msra.mxu0 %v63
    %778 = vmatprep.subr.mxu0 0.0
    %779 = vmatpush1.msra.mxu0 %v65
    %780 = vmatprep.subr.mxu0 0.0
    %781 = vmatpush1.msra.mxu0 %v67
    %782 = vmatprep.subr.mxu0 0.0
    %783 = vmatpush1.msra.mxu0 %v69
    %784 = vmatprep.subr.mxu0 0.0
    %785 = vmatpush1.msra.mxu0 %v71
    %786 = vmatprep.subr.mxu0 0.0
    %787 = vmatpush1.msra.mxu0 %v73
    %788 = vmatprep.subr.mxu0 0.0
    %789 = vmatpush1.msra.mxu0 0.0
    %790 = vmatprep.subr.mxu0 0.0
    %791 = vmatpush1.msra.mxu0 0.0
    %792 = vmatprep.subr.mxu0 0.0
    %793 = vmatpush1.msra.mxu0 0.0
    %794 = vmatprep.subr.mxu0 0.0
    %795 = vmatpush1.msra.mxu0 0.0
    %796 = vmatprep.subr.mxu0 0.0
    %797 = vmatpush1.msra.mxu0 0.0
    %798 = vmatprep.subr.mxu0 0.0
    %799 = vmatpush1.msra.mxu0 0.0
    %800 = vmatprep.subr.mxu0 0.0
    %801 = vmatpush1.msra.mxu0 0.0
    %802 = vmatprep.subr.mxu0 0.0
    %803 = vmatpush1.msra.mxu0 0.0
    %804 = vmatprep.subr.mxu0 0.0
    %805 = vmatpush1.msra.mxu0 0.0
    %806 = vmatprep.subr.mxu0 0.0
    %807 = vmatpush1.msra.mxu0 0.0
    %808 = vmatprep.subr.mxu0 0.0
    %809 = vmatpush1.msra.mxu0 0.0
    %810 = vmatprep.subr.mxu0 0.0
    %811 = vmatpush1.msra.mxu0 0.0
    %812 = vmatprep.subr.mxu0 0.0
    %813 = vmatpush1.msra.mxu0 0.0
    %814 = vmatprep.subr.mxu0 0.0
    %815 = vmatpush1.msra.mxu0 0.0
    %816 = vmatprep.subr.mxu0 0.0
    %817 = vmatpush1.msra.mxu0 0.0
    %818 = vmatprep.subr.mxu0 0.0
    %819 = vmatpush1.msra.mxu0 0.0
    %820 = vmatprep.mubr.f32.mxu0 0.0
    %821 = vmatmul.mubr.f32.gmra.mrb[0].mxu0 %v750
    %v822 = vpop.f32.mrb[0].mxu0
    %v823 = vadd.f32 %v755, %v822
    %v824 = vpop.f32.mrb[0].mxu0
    %825 = vmatprep.mubr.f32.mxu0 0.0
    %826 = vmatmul.mubr.f32.gmra.mrb[0].mxu0 %v751
    %v827 = vpop.f32.mrb[0].mxu0
    %v828 = vadd.f32 %v755, %v827
    %v829 = vpop.f32.mrb[0].mxu0
    %830 = vdwg.mxu0
    %v831 = vadd.f32 %v823, %v663
    %v832 = vadd.f32 %v828, %v664
    %v833 = vsel %vm90, %v831, 0.0
    %834 = vadd.xlane.f32.xlu0 %v833
    %v835 = vpop.xlane.xlu0 %834
    %v836 = vsel %vm90, %v832, 0.0
    %837 = vadd.xlane.f32.xlu0 %v836
    %v838 = vpop.xlane.xlu0 %837
    %v839 = vmul.f32 %v835, %v632
    %v840 = vmul.f32 %v838, %v632
    %v841 = vsub.f32 %v831, %v839
    %v842 = vsub.f32 %v832, %v840
    %v843 = vmul.f32 %v841, %v841
    %v844 = vmul.f32 %v842, %v842
    %v845 = vsel %vm90, %v843, 0.0
    %846 = vadd.xlane.f32.xlu0 %v845
    %v847 = vpop.xlane.xlu0 %846
    %v848 = vsel %vm90, %v844, 0.0
    %849 = vadd.xlane.f32.xlu0 %v848
    %v850 = vpop.xlane.xlu0 %849
    %v851 = vmul.f32 %v847, %v632
    %v852 = vmul.f32 %v850, %v632
    %v853 = vadd.f32 %v851, 1e-05
    %v854 = vadd.f32 %v852, 1e-05
    %v855 = vrsqrt.pop %v853
    %v856 = vrsqrt.pop %v854
    %v857 = vmul.f32 %v841, %v855
    %v858 = vmul.f32 %v842, %v856
    %v859 = vlaneseq
    %v860 = vshrl.u32 %v859, 7
    %v861 = vsub.s32 5, %v860
    %v862 = vrot.slane %v28, %v861
    %v863 = vmul.f32 %v857, %v862
    %v864 = vmul.f32 %v858, %v862
    %v865 = vlaneseq
    %v866 = vshrl.u32 %v865, 7
    %v867 = vsub.s32 6, %v866
    %v868 = vrot.slane %v28, %v867
    %v869 = vadd.f32 %v863, %v868
    %v870 = vadd.f32 %v864, %v868
    %871 = vst.msk [vmem:[#allocation2] sm:$0xff] %vm90, %v869
    %872 = vst.msk [vmem:[#allocation2 + $0x8] sm:$0xff] %vm90, %v870
    // Predicated region
    $region26: #{gat_transformer_layer.1} parent=1 // pred_check
      _
    $region27: #{gat_transformer_layer.1} parent=1 // pred_check_branch
      %874 = sbr.rel (0) target = $region29
    $region28: #{gat_transformer_layer.1} parent=1 // pred_region
      %s876 = ssub.s32 256, 256
      %877 = vsyncadd [#allocation3], %s876
      %s878 = sshll.u32 [#allocation2], 4
      %s879 = int_to_ptr.vmem [resolvable:$true] %s878
      %884 = dma.vmem_to_hbm [thread:$0]  %s879, 256, %s6, [#allocation3], 128, 128, 8
    $region29: #{gat_transformer_layer.1} parent=1 // pred_fallthru
      _
    // Predicated region
    $region30: #{gat_transformer_layer.1} parent=1 // pred_check
      _
    $region31: #{gat_transformer_layer.1} parent=1 // pred_check_branch
      %886 = sbr.rel (0) target = $region33
    $region32: #{gat_transformer_layer.1} parent=1 // pred_region
      %887 = dma.done [#allocation3], 256
    $region33: #{gat_transformer_layer.1} parent=1 // pred_fallthru
      _
    %888 = vsyncpa [#allocation3], 1

</llo_original>
